<compile_context>
chip_gen: v7x
topology: tpu7x:2x2x1
jax: 0.10.0
libtpu: 0.0.40
codegen_flags: <defaults>
</compile_context>

<pallas_src>
import jax
import jax.numpy as jnp
from jax.experimental import pallas as pl
from jax.experimental.pallas import tpu as pltpu

RM, DT, B0, BETA = 1.0, 1.0, 0.2, 1.8


def adaptive_lif_kernel(alpha_ref, rho_ref, u_ref, eta_ref, x_ref,
                        spk_ref, u_out_ref, eta_out_ref):
    alpha = alpha_ref[...]          # (1, TH), broadcasts over batch rows
    rho = rho_ref[...]              # (1, TH)
    u = u_ref[...]                  # (TB, TH)
    eta = eta_ref[...]              # (TB, TH)
    x = x_ref[...]                  # (TB, TH)

    # neuron_charge
    u_chg = u * alpha + (1.0 - alpha) * (RM * x)

    # neuron_fire (Heaviside forward of the surrogate)
    v_th = B0 + BETA * eta
    spikes = (u_chg - v_th > 0.0).astype(u_chg.dtype)

    # update_neuronstat_after_fire (uses OLD eta; v_th already == eta*beta + b0)
    u_out_ref[...] = u_chg - spikes * v_th
    eta_out_ref[...] = rho * (eta - spikes) + spikes   # == rho*eta + (1-rho)*spk
    spk_ref[...] = spikes


def _pick_tile(dim, candidates):
    for c in candidates:
        if dim % c == 0:
            return c
    return dim  # fall back to the full (unblocked) dimension


def adaptive_lif_step(tau_m, tau_adp, u, eta, x, *, tb=None, th=None):
    """One AdaptiveLIF forward step. Returns (spikes, u_new, eta_new)."""
    B, H = x.shape

    # alpha / rho depend only on the fixed (1, H) parameters -> hoist the
    # divide + exp out of the per-element stream.
    alpha = jnp.exp(-DT / tau_m).astype(x.dtype)     # (1, H)
    rho = jnp.exp(-DT / tau_adp).astype(x.dtype)     # (1, H)

    # Lane-dense tiles: H tiled in large multiples of 128 (unmasked stores),
    # batch tiled in multiples of 8 (f32 sublane).  Worst case 6 dense streams
    # x 2 buffers x 256x1024xf32 = 12 MiB, well under the 48 MiB VMEM request
    # (itself under v7x's 64 MiB physical VMEM).
    if tb is None:
        tb = _pick_tile(B, (256, 128, 64, 32, 16, 8))
    if th is None:
        th = _pick_tile(H, (1024, 512, 256, 128))
    grid = (pl.cdiv(B, tb), pl.cdiv(H, th))

    dense = pl.BlockSpec((tb, th), lambda i, j: (i, j))
    per_neuron = pl.BlockSpec((1, th), lambda i, j: (0, j))
    out_sd = jax.ShapeDtypeStruct((B, H), x.dtype)

    return pl.pallas_call(
        adaptive_lif_kernel,
        grid=grid,
        in_specs=[per_neuron, per_neuron, dense, dense, dense],
        out_specs=(dense, dense, dense),
        out_shape=(out_sd, out_sd, out_sd),
        # State updated in place: u -> u_new, eta -> eta_new.
        input_output_aliases={2: 1, 3: 2},
        compiler_params=pltpu.CompilerParams(
            dimension_semantics=("parallel", "parallel"),
            vmem_limit_bytes=48 * 1024 * 1024,
        ),
    )(alpha, rho, u, eta, x)


def _reference(tau_m, tau_adp, u, eta, x):
    # Pure-JAX mirror of the original PyTorch math (un-refactored).
    alpha = jnp.exp(-DT / tau_m)
    u_chg = u * alpha + (1.0 - alpha) * RM * x
    v_th = B0 + BETA * eta
    spikes = (u_chg - v_th > 0.0).astype(u_chg.dtype)
    u_new = u_chg - spikes * (eta * BETA + B0)
    rho = jnp.exp(-DT / tau_adp)
    eta_new = rho * eta + (1.0 - rho) * spikes
    return spikes, u_new, eta_new


if __name__ == "__main__":
    B, H = 16, 256   # batch (multiple of 8), hidden (module size = [H])

    key = jax.random.PRNGKey(0)
    k_tm, k_ta, k_x = jax.random.split(key, 3)

    # Deterministic parameter init matching nn.init.normal_(tau_m, 200, 25)
    # and nn.init.normal_(tau_adp, 20, 5).
    tau_m = (200.0 + 25.0 * jax.random.normal(k_tm, (1, H))).astype(jnp.float32)
    tau_adp = (20.0 + 5.0 * jax.random.normal(k_ta, (1, H))).astype(jnp.float32)

    # State after reset_state(): u = 0, eta = b0 (materialized as (B, H)).
    u0 = jnp.zeros((B, H), jnp.float32)
    eta0 = jnp.full((B, H), B0, jnp.float32)

    # Example input (e.g. synaptic current at one timestep).
    x = jax.random.normal(k_x, (B, H), jnp.float32)

    # Compute the pure-JAX reference BEFORE the kernel call: u0/eta0 are
    # donated (aliased in place) to the kernel.
    r_spk, r_u, r_eta = _reference(tau_m, tau_adp, u0, eta0, x)
    jax.block_until_ready((r_spk, r_u, r_eta))

    # Explicit small tiles so the demo exercises a real multi-tile grid (2, 2).
    spikes, u_new, eta_new = adaptive_lif_step(tau_m, tau_adp, u0, eta0, x,
                                               tb=8, th=128)
    jax.block_until_ready((spikes, u_new, eta_new))

    assert jnp.allclose(spikes, r_spk)
    assert jnp.allclose(u_new, r_u, atol=1e-6)
    assert jnp.allclose(eta_new, r_eta, atol=1e-6)

    print("KERNEL_OK")
</pallas_src>

<mosaic_0001>
module attributes {stable_mosaic.version = 11 : i64} {
  func.func @adaptive_lif_kernel(%arg0: i32, %arg1: i32, %arg2: memref<1x128xf32, #tpu.memory_space<vmem>>, %arg3: memref<1x128xf32, #tpu.memory_space<vmem>>, %arg4: memref<8x128xf32, #tpu.memory_space<vmem>>, %arg5: memref<8x128xf32, #tpu.memory_space<vmem>>, %arg6: memref<8x128xf32, #tpu.memory_space<vmem>>, %arg7: memref<8x128xf32, #tpu.memory_space<vmem>>, %arg8: memref<8x128xf32, #tpu.memory_space<vmem>>, %arg9: memref<8x128xf32, #tpu.memory_space<vmem>>) attributes {dimension_semantics = [#tpu.dimension_semantics<parallel>, #tpu.dimension_semantics<parallel>], iteration_bounds = array<i64: 2, 2>, scalar_prefetch = 0 : i64, scratch_operands = 0 : i64, tpu.core_type = #tpu.core_type<tc>, window_params = [{transform_indices = @transform_0, window_bounds = array<i64: 1, 128>}, {transform_indices = @transform_1, window_bounds = array<i64: 1, 128>}, {transform_indices = @transform_2, window_bounds = array<i64: 8, 128>}, {transform_indices = @transform_3, window_bounds = array<i64: 8, 128>}, {transform_indices = @transform_4, window_bounds = array<i64: 8, 128>}, {transform_indices = @transform_5, window_bounds = array<i64: 8, 128>}, {transform_indices = @transform_6, window_bounds = array<i64: 8, 128>}, {transform_indices = @transform_7, window_bounds = array<i64: 8, 128>}]} {
    %c0 = arith.constant 0 : index
    %c0_0 = arith.constant 0 : index
    %0 = vector.load %arg2[%c0, %c0_0] : memref<1x128xf32, #tpu.memory_space<vmem>>, vector<1x128xf32>
    %c0_1 = arith.constant 0 : index
    %c0_2 = arith.constant 0 : index
    %1 = vector.load %arg3[%c0_1, %c0_2] : memref<1x128xf32, #tpu.memory_space<vmem>>, vector<1x128xf32>
    %c0_3 = arith.constant 0 : index
    %c0_4 = arith.constant 0 : index
    %2 = vector.load %arg4[%c0_3, %c0_4] : memref<8x128xf32, #tpu.memory_space<vmem>>, vector<8x128xf32>
    %c0_5 = arith.constant 0 : index
    %c0_6 = arith.constant 0 : index
    %3 = vector.load %arg5[%c0_5, %c0_6] : memref<8x128xf32, #tpu.memory_space<vmem>>, vector<8x128xf32>
    %c0_7 = arith.constant 0 : index
    %c0_8 = arith.constant 0 : index
    %4 = vector.load %arg6[%c0_7, %c0_8] : memref<8x128xf32, #tpu.memory_space<vmem>>, vector<8x128xf32>
    %5 = vector.broadcast %0 : vector<1x128xf32> to vector<8x128xf32>
    %6 = arith.mulf %2, %5 : vector<8x128xf32>
    %cst = arith.constant 1.000000e+00 : f32
    %7 = vector.broadcast %cst : f32 to vector<1x128xf32>
    %8 = arith.subf %7, %0 : vector<1x128xf32>
    %cst_9 = arith.constant 1.000000e+00 : f32
    %9 = vector.broadcast %cst_9 : f32 to vector<8x128xf32>
    %10 = arith.mulf %9, %4 : vector<8x128xf32>
    %11 = vector.broadcast %8 : vector<1x128xf32> to vector<8x128xf32>
    %12 = arith.mulf %11, %10 : vector<8x128xf32>
    %13 = arith.addf %6, %12 : vector<8x128xf32>
    %cst_10 = arith.constant 1.800000e+00 : f32
    %14 = vector.broadcast %cst_10 : f32 to vector<8x128xf32>
    %15 = arith.mulf %14, %3 : vector<8x128xf32>
    %cst_11 = arith.constant 2.000000e-01 : f32
    %16 = vector.broadcast %cst_11 : f32 to vector<8x128xf32>
    %17 = arith.addf %16, %15 : vector<8x128xf32>
    %18 = arith.subf %13, %17 : vector<8x128xf32>
    %cst_12 = arith.constant 0.000000e+00 : f32
    %19 = vector.broadcast %cst_12 : f32 to vector<8x128xf32>
    %20 = arith.cmpf ogt, %18, %19 : vector<8x128xf32>
    %21 = arith.extui %20 : vector<8x128xi1> to vector<8x128xi32>
    %22 = arith.sitofp %21 : vector<8x128xi32> to vector<8x128xf32>
    %23 = arith.mulf %22, %17 : vector<8x128xf32>
    %24 = arith.subf %13, %23 : vector<8x128xf32>
    %c0_13 = arith.constant 0 : index
    %c0_14 = arith.constant 0 : index
    %25 = vector.load %arg8[%c0_13, %c0_14] : memref<8x128xf32, #tpu.memory_space<vmem>>, vector<8x128xf32>
    tpu.vector_store %arg8[%c0_13, %c0_14], %24 {strides = array<i32>} : memref<8x128xf32, #tpu.memory_space<vmem>>, vector<8x128xf32>,
    %26 = arith.subf %3, %22 : vector<8x128xf32>
    %27 = vector.broadcast %1 : vector<1x128xf32> to vector<8x128xf32>
    %28 = arith.mulf %27, %26 : vector<8x128xf32>
    %29 = arith.addf %28, %22 : vector<8x128xf32>
    %c0_15 = arith.constant 0 : index
    %c0_16 = arith.constant 0 : index
    %30 = vector.load %arg9[%c0_15, %c0_16] : memref<8x128xf32, #tpu.memory_space<vmem>>, vector<8x128xf32>
    tpu.vector_store %arg9[%c0_15, %c0_16], %29 {strides = array<i32>} : memref<8x128xf32, #tpu.memory_space<vmem>>, vector<8x128xf32>,
    %c0_17 = arith.constant 0 : index
    %c0_18 = arith.constant 0 : index
    %31 = vector.load %arg7[%c0_17, %c0_18] : memref<8x128xf32, #tpu.memory_space<vmem>>, vector<8x128xf32>
    tpu.vector_store %arg7[%c0_17, %c0_18], %22 {strides = array<i32>} : memref<8x128xf32, #tpu.memory_space<vmem>>, vector<8x128xf32>,
    return
  }
  func.func @transform_0(%arg0: i32, %arg1: i32) -> (i32, i32) {
    %c0_i32 = arith.constant 0 : i32
    %c0_i32_0 = arith.constant 0 : i32
    return %c0_i32, %arg1 : i32, i32
  }
  func.func @transform_1(%arg0: i32, %arg1: i32) -> (i32, i32) {
    %c0_i32 = arith.constant 0 : i32
    %c0_i32_0 = arith.constant 0 : i32
    return %c0_i32, %arg1 : i32, i32
  }
  func.func @transform_2(%arg0: i32, %arg1: i32) -> (i32, i32) {
    %c0_i32 = arith.constant 0 : i32
    return %arg0, %arg1 : i32, i32
  }
  func.func @transform_3(%arg0: i32, %arg1: i32) -> (i32, i32) {
    %c0_i32 = arith.constant 0 : i32
    return %arg0, %arg1 : i32, i32
  }
  func.func @transform_4(%arg0: i32, %arg1: i32) -> (i32, i32) {
    %c0_i32 = arith.constant 0 : i32
    return %arg0, %arg1 : i32, i32
  }
  func.func @transform_5(%arg0: i32, %arg1: i32) -> (i32, i32) {
    %c0_i32 = arith.constant 0 : i32
    return %arg0, %arg1 : i32, i32
  }
  func.func @transform_6(%arg0: i32, %arg1: i32) -> (i32, i32) {
    %c0_i32 = arith.constant 0 : i32
    return %arg0, %arg1 : i32, i32
  }
  func.func @transform_7(%arg0: i32, %arg1: i32) -> (i32, i32) {
    %c0_i32 = arith.constant 0 : i32
    return %arg0, %arg1 : i32, i32
  }
}

</mosaic_0001>

<llo_original>
// kernel: tpu_custom_call.1
$region0: #{tpu_custom_call.1}
  #allocation0 [shape = 'u32[]', space=smem, size = 0x4, offset = 0x4, fixed_abs, tag = 'smem constant byte address 0x4 - core index']
  #allocation1 [shape = 'u32[144,128]{1,0:T(1,128)}', space=vmem, size = 0x12000, scoped, tag = 'internal scratch']
  %s0 = inlined_call_operand.vmem [shape: f32[1,256], index: 0, kind: input, shape index: {}]
  %s1 = inlined_call_operand.vmem [shape: f32[1,256], index: 1, kind: input, shape index: {}]
  %s2 = inlined_call_operand.hbm [shape: f32[16,256], index: 2, kind: input, shape index: {}, may-alias: {2,6}]
  %s3 = inlined_call_operand.hbm [shape: f32[16,256], index: 3, kind: input, shape index: {}, may-alias: {3,7}]
  %s4 = inlined_call_operand.vmem [shape: f32[16,256], index: 4, kind: input, shape index: {}]
  %s5 = inlined_call_operand.hbm [shape: f32[16,256], index: 5, kind: output, shape index: {0}]
  %s6 = inlined_call_operand.hbm [shape: f32[16,256], index: 6, kind: output, shape index: {1}, may-alias: {2,6}]
  %s7 = inlined_call_operand.hbm [shape: f32[16,256], index: 7, kind: output, shape index: {2}, may-alias: {3,7}]
  %8 = xla_tuple %s5, %s6, %s7
  %s9 = sld [smem:[#allocation0]]
  $region77: #{tpu_custom_call.1} parent=0
    _
  %s11 = ssub.s32 1, %s9
  %s12 = scalar_select 0, %s11, %s9
  $region1: #{tpu_custom_call.1} parent=0
    #allocation2 [shape = 'u8[8192]{0}', space=vmem, size = 0x2000, scoped, tag = 'input window, operand 2']
    #allocation3 [shape = 's32[2]{0}', space=sflag, size = 0x8, scoped, tag = 'scoped memory for tpu_custom_call.1']
    #allocation4 [shape = 's32[2]{0}', space=sflag, size = 0x8, scoped, tag = 'scoped memory for tpu_custom_call.1']
    #allocation5 [shape = 'u8[8192]{0}', space=vmem, size = 0x2000, scoped, tag = 'input window, operand 3']
    #allocation6 [shape = 's32[2]{0}', space=sflag, size = 0x8, scoped, tag = 'scoped memory for tpu_custom_call.1']
    #allocation7 [shape = 'u8[8192]{0}', space=vmem, size = 0x2000, scoped, tag = 'output window, operand 0']
    #allocation8 [shape = 'u8[8192]{0}', space=vmem, size = 0x2000, scoped, tag = 'output window, operand 1']
    #allocation9 [shape = 's32[2]{0}', space=sflag, size = 0x8, scoped, tag = 'scoped memory for tpu_custom_call.1']
    #allocation10 [shape = 'u8[8192]{0}', space=vmem, size = 0x2000, scoped, tag = 'output window, operand 2']
    %13 = vsyncpa [#allocation3], 0
    %s14 = scalar_lea.sflag [#allocation3], 1
    %15 = vsyncpa %s14, 0
    %16 = vsyncpa [#allocation6], 0
    %s17 = scalar_lea.sflag [#allocation6], 1
    %18 = vsyncpa %s17, 0
    %19 = vsyncpa [#allocation4], 0
    %s20 = scalar_lea.sflag [#allocation4], 1
    %21 = vsyncpa %s20, 0
    %22 = vsyncpa [#allocation9], 0
    %s23 = scalar_lea.sflag [#allocation9], 1
    %24 = vsyncpa %s23, 0
    loop: start=0, step=1, limit=6
    $region2: #{tpu_custom_call.1} parent=1 // loop_pre_header
      _
    $region3: #{tpu_custom_call.1} parent=1 // loop_header
      %s26 = sphi 0, %s30
      %p27 = scmp.ge.s32.totalorder %s26, 6
      %s33 = sphi 0, %s45
      %s34 = sphi 0, %s41
      %s35 = sphi 0, %s33
      %s36 = sphi 0, %s34
      %s37 = sphi 0, %s35
      %s38 = sphi 0, %s36
      %s48 = sphi 0, %s50
      %s51 = sphi 0, %s48
      %s52 = sphi 0, %s51
      %s68 = sphi 0, %s52
      %s74 = sphi 0, %s76
      %s77 = sphi 0, %s74
      %s78 = sphi 0, %s77
      %s94 = sphi 0, %s78
      %s102 = sphi 0, %s104
      %s105 = sphi 0, %s102
      %s106 = sphi 0, %s105
      %s122 = sphi 0, %s106
      %s130 = sphi 0, %s132
      %s133 = sphi 0, %s130
      %s134 = sphi 0, %s133
      %s150 = sphi 0, %s134
      %s158 = sphi 0, %s160
      %s161 = sphi 0, %s158
      %s162 = sphi 0, %s161
      %s178 = sphi 0, %s162
      %s186 = sphi 0, %s188
      %s189 = sphi 0, %s186
      %s190 = sphi 0, %s189
      %s206 = sphi 0, %s190
      %s214 = sphi 0, %s216
      %s217 = sphi 0, %s214
      %s218 = sphi 0, %s217
      %s234 = sphi 0, %s218
      %s242 = sphi 0, %s244
      %s245 = sphi 0, %s242
      %s246 = sphi 0, %s245
      %s262 = sphi 0, %s246
    $region4: #{tpu_custom_call.1} parent=1 // loop_header_branch
      %29 = sbr.rel (%p27) target = $region8
    $region5: #{tpu_custom_call.1} parent=1 // loop_body
      %s31 = ssub.s32 %s26, 1
      %s32 = ssub.s32 %s26, 2
      %s39 = sadd.s32 1, %s34
      %p40 = scmp.ge.s32.totalorder %s39, 2
      %s41 = scalar_select %p40, 0, %s39
      %s42 = sadd.s32 1, %s33
      %s43 = scalar_select %p40, %s42, %s33
      %p44 = scmp.ge.s32.totalorder %s43, 2
      %s45 = scalar_select %p44, 0, %s43
      %s46 = ssub.s32 %s34, %s41
      %p47 = scmp.eq.s32.totalorder %s46, 0
      %s49 = sadd.s32 %s48, 1
      %s50 = scalar_select %p47, %s48, %s49
      %p53 = pneg %p47
      %p54 = scmp.eq.s32.totalorder %s26, 3
      %p55 = por %p53, %p54
      %p56 = scmp.ne.s32.totalorder %s48, %s51
      %p57 = scmp.eq.s32.totalorder %s26, 0
      %p58 = por %p56, %p57
      %p59 = scmp.ne.s32.totalorder %s48, %s51
      %p60 = scmp.eq.s32.totalorder %s31, 3
      %p61 = por %p59, %p60
      %p62 = scmp.ne.s32.totalorder %s51, %s52
      %p63 = scmp.eq.s32.totalorder %s31, 0
      %p64 = por %p62, %p63
      %p65 = scmp.ne.s32.totalorder %s51, %s52
      %p66 = scmp.eq.s32.totalorder %s32, 3
      %p67 = por %p65, %p66
      %p69 = scmp.ne.s32.totalorder %s52, %s68
      %p70 = scmp.eq.s32.totalorder %s32, 0
      %p71 = por %p69, %p70
      %s72 = ssub.s32 %s34, %s41
      %p73 = scmp.eq.s32.totalorder %s72, 0
      %s75 = sadd.s32 %s74, 1
      %s76 = scalar_select %p73, %s74, %s75
      %p79 = pneg %p73
      %p80 = scmp.eq.s32.totalorder %s26, 3
      %p81 = por %p79, %p80
      %p82 = scmp.ne.s32.totalorder %s74, %s77
      %p83 = scmp.eq.s32.totalorder %s26, 0
      %p84 = por %p82, %p83
      %p85 = scmp.ne.s32.totalorder %s74, %s77
      %p86 = scmp.eq.s32.totalorder %s31, 3
      %p87 = por %p85, %p86
      %p88 = scmp.ne.s32.totalorder %s77, %s78
      %p89 = scmp.eq.s32.totalorder %s31, 0
      %p90 = por %p88, %p89
      %p91 = scmp.ne.s32.totalorder %s77, %s78
      %p92 = scmp.eq.s32.totalorder %s32, 3
      %p93 = por %p91, %p92
      %p95 = scmp.ne.s32.totalorder %s78, %s94
      %p96 = scmp.eq.s32.totalorder %s32, 0
      %p97 = por %p95, %p96
      %s98 = ssub.s32 %s33, %s45
      %s99 = ssub.s32 %s34, %s41
      %s100 = sor.u32 %s98, %s99
      %p101 = scmp.eq.s32.totalorder %s100, 0
      %s103 = sadd.s32 %s102, 1
      %s104 = scalar_select %p101, %s102, %s103
      %p107 = pneg %p101
      %p108 = scmp.eq.s32.totalorder %s26, 3
      %p109 = por %p107, %p108
      %p110 = scmp.ne.s32.totalorder %s102, %s105
      %p111 = scmp.eq.s32.totalorder %s26, 0
      %p112 = por %p110, %p111
      %p113 = scmp.ne.s32.totalorder %s102, %s105
      %p114 = scmp.eq.s32.totalorder %s31, 3
      %p115 = por %p113, %p114
      %p116 = scmp.ne.s32.totalorder %s105, %s106
      %p117 = scmp.eq.s32.totalorder %s31, 0
      %p118 = por %p116, %p117
      %p119 = scmp.ne.s32.totalorder %s105, %s106
      %p120 = scmp.eq.s32.totalorder %s32, 3
      %p121 = por %p119, %p120
      %p123 = scmp.ne.s32.totalorder %s106, %s122
      %p124 = scmp.eq.s32.totalorder %s32, 0
      %p125 = por %p123, %p124
      %s126 = ssub.s32 %s33, %s45
      %s127 = ssub.s32 %s34, %s41
      %s128 = sor.u32 %s126, %s127
      %p129 = scmp.eq.s32.totalorder %s128, 0
      %s131 = sadd.s32 %s130, 1
      %s132 = scalar_select %p129, %s130, %s131
      %p135 = pneg %p129
      %p136 = scmp.eq.s32.totalorder %s26, 3
      %p137 = por %p135, %p136
      %p138 = scmp.ne.s32.totalorder %s130, %s133
      %p139 = scmp.eq.s32.totalorder %s26, 0
      %p140 = por %p138, %p139
      %p141 = scmp.ne.s32.totalorder %s130, %s133
      %p142 = scmp.eq.s32.totalorder %s31, 3
      %p143 = por %p141, %p142
      %p144 = scmp.ne.s32.totalorder %s133, %s134
      %p145 = scmp.eq.s32.totalorder %s31, 0
      %p146 = por %p144, %p145
      %p147 = scmp.ne.s32.totalorder %s133, %s134
      %p148 = scmp.eq.s32.totalorder %s32, 3
      %p149 = por %p147, %p148
      %p151 = scmp.ne.s32.totalorder %s134, %s150
      %p152 = scmp.eq.s32.totalorder %s32, 0
      %p153 = por %p151, %p152
      %s154 = ssub.s32 %s33, %s45
      %s155 = ssub.s32 %s34, %s41
      %s156 = sor.u32 %s154, %s155
      %p157 = scmp.eq.s32.totalorder %s156, 0
      %s159 = sadd.s32 %s158, 1
      %s160 = scalar_select %p157, %s158, %s159
      %p163 = pneg %p157
      %p164 = scmp.eq.s32.totalorder %s26, 3
      %p165 = por %p163, %p164
      %p166 = scmp.ne.s32.totalorder %s158, %s161
      %p167 = scmp.eq.s32.totalorder %s26, 0
      %p168 = por %p166, %p167
      %p169 = scmp.ne.s32.totalorder %s158, %s161
      %p170 = scmp.eq.s32.totalorder %s31, 3
      %p171 = por %p169, %p170
      %p172 = scmp.ne.s32.totalorder %s161, %s162
      %p173 = scmp.eq.s32.totalorder %s31, 0
      %p174 = por %p172, %p173
      %p175 = scmp.ne.s32.totalorder %s161, %s162
      %p176 = scmp.eq.s32.totalorder %s32, 3
      %p177 = por %p175, %p176
      %p179 = scmp.ne.s32.totalorder %s162, %s178
      %p180 = scmp.eq.s32.totalorder %s32, 0
      %p181 = por %p179, %p180
      %s182 = ssub.s32 %s33, %s45
      %s183 = ssub.s32 %s34, %s41
      %s184 = sor.u32 %s182, %s183
      %p185 = scmp.eq.s32.totalorder %s184, 0
      %s187 = sadd.s32 %s186, 1
      %s188 = scalar_select %p185, %s186, %s187
      %p191 = pneg %p185
      %p192 = scmp.eq.s32.totalorder %s26, 3
      %p193 = por %p191, %p192
      %p194 = scmp.ne.s32.totalorder %s186, %s189
      %p195 = scmp.eq.s32.totalorder %s26, 0
      %p196 = por %p194, %p195
      %p197 = scmp.ne.s32.totalorder %s186, %s189
      %p198 = scmp.eq.s32.totalorder %s31, 3
      %p199 = por %p197, %p198
      %p200 = scmp.ne.s32.totalorder %s189, %s190
      %p201 = scmp.eq.s32.totalorder %s31, 0
      %p202 = por %p200, %p201
      %p203 = scmp.ne.s32.totalorder %s189, %s190
      %p204 = scmp.eq.s32.totalorder %s32, 3
      %p205 = por %p203, %p204
      %p207 = scmp.ne.s32.totalorder %s190, %s206
      %p208 = scmp.eq.s32.totalorder %s32, 0
      %p209 = por %p207, %p208
      %s210 = ssub.s32 %s33, %s45
      %s211 = ssub.s32 %s34, %s41
      %s212 = sor.u32 %s210, %s211
      %p213 = scmp.eq.s32.totalorder %s212, 0
      %s215 = sadd.s32 %s214, 1
      %s216 = scalar_select %p213, %s214, %s215
      %p219 = pneg %p213
      %p220 = scmp.eq.s32.totalorder %s26, 3
      %p221 = por %p219, %p220
      %p222 = scmp.ne.s32.totalorder %s214, %s217
      %p223 = scmp.eq.s32.totalorder %s26, 0
      %p224 = por %p222, %p223
      %p225 = scmp.ne.s32.totalorder %s214, %s217
      %p226 = scmp.eq.s32.totalorder %s31, 3
      %p227 = por %p225, %p226
      %p228 = scmp.ne.s32.totalorder %s217, %s218
      %p229 = scmp.eq.s32.totalorder %s31, 0
      %p230 = por %p228, %p229
      %p231 = scmp.ne.s32.totalorder %s217, %s218
      %p232 = scmp.eq.s32.totalorder %s32, 3
      %p233 = por %p231, %p232
      %p235 = scmp.ne.s32.totalorder %s218, %s234
      %p236 = scmp.eq.s32.totalorder %s32, 0
      %p237 = por %p235, %p236
      %s238 = ssub.s32 %s33, %s45
      %s239 = ssub.s32 %s34, %s41
      %s240 = sor.u32 %s238, %s239
      %p241 = scmp.eq.s32.totalorder %s240, 0
      %s243 = sadd.s32 %s242, 1
      %s244 = scalar_select %p241, %s242, %s243
      %p247 = pneg %p241
      %p248 = scmp.eq.s32.totalorder %s26, 3
      %p249 = por %p247, %p248
      %p250 = scmp.ne.s32.totalorder %s242, %s245
      %p251 = scmp.eq.s32.totalorder %s26, 0
      %p252 = por %p250, %p251
      %p253 = scmp.ne.s32.totalorder %s242, %s245
      %p254 = scmp.eq.s32.totalorder %s31, 3
      %p255 = por %p253, %p254
      %p256 = scmp.ne.s32.totalorder %s245, %s246
      %p257 = scmp.eq.s32.totalorder %s31, 0
      %p258 = por %p256, %p257
      %p259 = scmp.ne.s32.totalorder %s245, %s246
      %p260 = scmp.eq.s32.totalorder %s32, 3
      %p261 = por %p259, %p260
      %p263 = scmp.ne.s32.totalorder %s246, %s262
      %p264 = scmp.eq.s32.totalorder %s32, 0
      %p265 = por %p263, %p264
      %p266 = scmp.le.s32.totalorder 1, %s26
      %p267 = scmp.lt.s32.totalorder %s26, 5
      %p268 = pnand %p266, %p267
      %p269 = pneg %p268
      // Predicated region
      $region9: #{tpu_custom_call.1} parent=5 // pred_check
        _
      $region10: #{tpu_custom_call.1} parent=5 // pred_check_branch
        %271 = sbr.rel (%p268) target = $region12
      $region11: #{tpu_custom_call.1} parent=5 // pred_region
        %s272 = ssub.s32 %s26, 1
      $region12: #{tpu_custom_call.1} parent=5 // pred_fallthru
        _
      %p273 = scmp.lt.s32.totalorder %s26, 4
      // Predicated region
      $region13: #{tpu_custom_call.1} parent=5 // pred_check
        %p274 = pneg %p273
      $region14: #{tpu_custom_call.1} parent=5 // pred_check_branch
        %276 = sbr.rel (%p274) target = $region16
      $region15: #{tpu_custom_call.1} parent=5 // pred_region
        // Predicated region
        $region17: #{tpu_custom_call.1} parent=15 // pred_check
          %p277 = pneg %p58
        $region18: #{tpu_custom_call.1} parent=15 // pred_check_branch
          %279 = sbr.rel (%p277) target = $region20
        $region19: #{tpu_custom_call.1} parent=15 // pred_region
          %p280 = scmp.lt.s32.totalorder %s34, 1
          %s281 = scalar_select %p280, %s34, 1
          %s282 = scalar_lea.vmem %s0, %s281
        $region20: #{tpu_custom_call.1} parent=15 // pred_fallthru
          _
        // Predicated region
        $region21: #{tpu_custom_call.1} parent=15 // pred_check
          %p283 = pneg %p84
        $region22: #{tpu_custom_call.1} parent=15 // pred_check_branch
          %285 = sbr.rel (%p283) target = $region24
        $region23: #{tpu_custom_call.1} parent=15 // pred_region
          %p286 = scmp.lt.s32.totalorder %s34, 1
          %s287 = scalar_select %p286, %s34, 1
          %s288 = scalar_lea.vmem %s1, %s287
        $region24: #{tpu_custom_call.1} parent=15 // pred_fallthru
          _
        // Predicated region
        $region25: #{tpu_custom_call.1} parent=15 // pred_check
          %p289 = pneg %p112
        $region26: #{tpu_custom_call.1} parent=15 // pred_check_branch
          %291 = sbr.rel (%p289) target = $region28
        $region27: #{tpu_custom_call.1} parent=15 // pred_region
          %s292 = sand.u32 %s102, 1
          %s293 = scalar_lea.sflag [#allocation3], %s292
          %s294 = sand.u32 %s102, 1
          %s295 = smul.addr %s294, 8
          %s296 = scalar_lea.vmem [#allocation2], %s295
          %s298 = ssub.s32 128, 128
          %299 = vsyncadd %s293, %s298
          %s300 = smul.addr %s33, 2
          %s301 = sadd.s32 %s34, %s300
          %s302 = smul.addr %s301, 128
          %s303 = scalar_lea.hbm %s2, %s302
          %s305 = sshll.u32 %s296, 4
          %s306 = int_to_ptr.vmem [resolvable:$true] %s305
          %308 = dma.hbm_to_vmem [thread:$0]  %s303, 128, %s306, %s293
        $region28: #{tpu_custom_call.1} parent=15 // pred_fallthru
          _
        // Predicated region
        $region29: #{tpu_custom_call.1} parent=15 // pred_check
          %p309 = pneg %p140
        $region30: #{tpu_custom_call.1} parent=15 // pred_check_branch
          %311 = sbr.rel (%p309) target = $region32
        $region31: #{tpu_custom_call.1} parent=15 // pred_region
          %s312 = sand.u32 %s130, 1
          %s313 = scalar_lea.sflag [#allocation6], %s312
          %s314 = sand.u32 %s130, 1
          %s315 = smul.addr %s314, 8
          %s316 = scalar_lea.vmem [#allocation5], %s315
          %s318 = ssub.s32 128, 128
          %319 = vsyncadd %s313, %s318
          %s320 = smul.addr %s33, 2
          %s321 = sadd.s32 %s34, %s320
          %s322 = smul.addr %s321, 128
          %s323 = scalar_lea.hbm %s3, %s322
          %s325 = sshll.u32 %s316, 4
          %s326 = int_to_ptr.vmem [resolvable:$true] %s325
          %328 = dma.hbm_to_vmem [thread:$0]  %s323, 128, %s326, %s313
        $region32: #{tpu_custom_call.1} parent=15 // pred_fallthru
          _
        // Predicated region
        $region33: #{tpu_custom_call.1} parent=15 // pred_check
          %p329 = pneg %p168
        $region34: #{tpu_custom_call.1} parent=15 // pred_check_branch
          %331 = sbr.rel (%p329) target = $region36
        $region35: #{tpu_custom_call.1} parent=15 // pred_region
          %p332 = scmp.lt.s32.totalorder %s33, 1
          %s333 = scalar_select %p332, %s33, 1
          %p334 = scmp.lt.s32.totalorder %s34, 1
          %s335 = scalar_select %p334, %s34, 1
          %s336 = smul.addr %s333, 2
          %s337 = sadd.s32 %s335, %s336
          %s338 = smul.addr %s337, 8
          %s339 = scalar_lea.vmem %s4, %s338
        $region36: #{tpu_custom_call.1} parent=15 // pred_fallthru
          _
      $region16: #{tpu_custom_call.1} parent=5 // pred_fallthru
        _
      %p340 = scmp.le.s32.totalorder 1, %s26
      %p341 = scmp.lt.s32.totalorder %s26, 5
      %p342 = pnand %p340, %p341
      %p343 = pneg %p342
      // Predicated region
      $region37: #{tpu_custom_call.1} parent=5 // pred_check
        _
      $region38: #{tpu_custom_call.1} parent=5 // pred_check_branch
        %345 = sbr.rel (%p342) target = $region40
      $region39: #{tpu_custom_call.1} parent=5 // pred_region
        %s346 = ssub.s32 %s26, 1
        %s347 = sand.u32 %s105, 1
        %s348 = scalar_lea.sflag [#allocation3], %s347
        %s349 = sand.u32 %s105, 1
        %s350 = smul.addr %s349, 8
        %s351 = scalar_lea.vmem [#allocation2], %s350
        // Predicated region
        $region41: #{tpu_custom_call.1} parent=39 // pred_check
          %p352 = pneg %p118
        $region42: #{tpu_custom_call.1} parent=39 // pred_check_branch
          %354 = sbr.rel (%p352) target = $region44
        $region43: #{tpu_custom_call.1} parent=39 // pred_region
          %355 = dma.done %s348, 128
        $region44: #{tpu_custom_call.1} parent=39 // pred_fallthru
          _
        %s356 = sand.u32 %s133, 1
        %s357 = scalar_lea.sflag [#allocation6], %s356
        %s358 = sand.u32 %s133, 1
        %s359 = smul.addr %s358, 8
        %s360 = scalar_lea.vmem [#allocation5], %s359
        // Predicated region
        $region45: #{tpu_custom_call.1} parent=39 // pred_check
          %p361 = pneg %p146
        $region46: #{tpu_custom_call.1} parent=39 // pred_check_branch
          %363 = sbr.rel (%p361) target = $region48
        $region47: #{tpu_custom_call.1} parent=39 // pred_region
          %364 = dma.done %s357, 128
        $region48: #{tpu_custom_call.1} parent=39 // pred_fallthru
          _
        %p365 = scmp.lt.s32.totalorder %s36, 1
        %s366 = scalar_select %p365, %s36, 1
        %s367 = scalar_lea.vmem %s0, %s366
        %p368 = pneg %p64
        %p369 = pneg %p61
        %p370 = scmp.lt.s32.totalorder %s36, 1
        %s371 = scalar_select %p370, %s36, 1
        %s372 = scalar_lea.vmem %s1, %s371
        %p373 = pneg %p90
        %p374 = pneg %p87
        %s375 = sand.u32 %s105, 1
        %s376 = scalar_lea.sflag [#allocation3], %s375
        %s377 = sand.u32 %s105, 1
        %s378 = smul.addr %s377, 8
        %s379 = scalar_lea.vmem [#allocation2], %s378
        %p380 = pneg %p118
        %p381 = pneg %p115
        %s382 = sand.u32 %s133, 1
        %s383 = scalar_lea.sflag [#allocation6], %s382
        %s384 = sand.u32 %s133, 1
        %s385 = smul.addr %s384, 8
        %s386 = scalar_lea.vmem [#allocation5], %s385
        %p387 = pneg %p146
        %p388 = pneg %p143
        %p389 = scmp.lt.s32.totalorder %s35, 1
        %s390 = scalar_select %p389, %s35, 1
        %p391 = scmp.lt.s32.totalorder %s36, 1
        %s392 = scalar_select %p391, %s36, 1
        %s393 = smul.addr %s390, 2
        %s394 = sadd.s32 %s392, %s393
        %s395 = smul.addr %s394, 8
        %s396 = scalar_lea.vmem %s4, %s395
        %p397 = pneg %p174
        %p398 = pneg %p171
        %p399 = pneg %p202
        %p400 = pneg %p199
        %s401 = sand.u32 %s189, 1
        %s402 = scalar_lea.sflag [#allocation4], %s401
        %s403 = sand.u32 %s189, 1
        %s404 = smul.addr %s403, 8
        %s405 = scalar_lea.vmem [#allocation7], %s404
        %p406 = pneg %p230
        %p407 = pneg %p227
        %s408 = sand.u32 %s31, 1
        %s409 = scalar_lea.sflag [#allocation9], %s408
        %s410 = sand.u32 %s217, 1
        %s411 = smul.addr %s410, 8
        %s412 = scalar_lea.vmem [#allocation8], %s411
        %p413 = pneg %p258
        %p414 = pneg %p255
        %s415 = sand.u32 %s31, 1
        %s416 = scalar_lea.sflag [#allocation9], %s415
        %s417 = sand.u32 %s245, 1
        %s418 = smul.addr %s417, 8
        %s419 = scalar_lea.vmem [#allocation10], %s418
        %p420 = scmp.lt.s32.totalorder %s36, 1
        %s421 = scalar_select %p420, %s36, 1
        %s422 = scalar_lea.vmem %s0, %s421
        %p423 = scmp.lt.s32.totalorder %s36, 1
        %s424 = scalar_select %p423, %s36, 1
        %s425 = scalar_lea.vmem %s1, %s424
        %p426 = scmp.lt.s32.totalorder %s35, 1
        %s427 = scalar_select %p426, %s35, 1
        %p428 = scmp.lt.s32.totalorder %s36, 1
        %s429 = scalar_select %p428, %s36, 1
        %s430 = smul.addr %s427, 2
        %s431 = sadd.s32 %s429, %s430
        %s432 = smul.addr %s431, 8
        %s433 = scalar_lea.vmem %s4, %s432
        %v434 = vld [vmem:[%s422] sm:$0x1]
        %v435 = vld [vmem:[%s425] sm:$0x1]
        %v436 = vld [vmem:[%s351] sm:$0xff]
        %v437 = vld [vmem:[%s360] sm:$0xff]
        %v438 = vld [vmem:[%s433] sm:$0xff]
        %v440 = vlaneseq
        %v441 = vshrl.u32 %v440, 7
        %v442 = vsub.s32 0, %v441
        %v443 = vrot.slane %v434, %v442
        %v445 = vmul.f32 %v436, %v443
        %v446 = vsub.f32 1.0, %v434
        %v448 = vlaneseq
        %v449 = vshrl.u32 %v448, 7
        %v450 = vsub.s32 0, %v449
        %v451 = vrot.slane %v446, %v450
        %v453 = vmul.f32 %v451, %v438
        %v454 = vadd.f32 %v445, %v453
        %v455 = vmul.f32 %v437, 1.8
        %v456 = vadd.f32 %v455, 0.2
        %v457 = vsub.f32 %v454, %v456
        %vm458 = vcmp.gt.f32.partialorder %v457, 0.0
        %v459 = vsel %vm458, 1, 0
        %v460 = vcvt.s32.f32 %v459
        %v461 = vmul.f32 %v460, %v456
        %v462 = vsub.f32 %v454, %v461
        %463 = vst [vmem:[%s412] sm:$0xff] %v462
        %v464 = vsub.f32 %v437, %v460
        %v466 = vlaneseq
        %v467 = vshrl.u32 %v466, 7
        %v468 = vsub.s32 0, %v467
        %v469 = vrot.slane %v435, %v468
        %v471 = vmul.f32 %v469, %v464
        %v472 = vadd.f32 %v471, %v460
        %473 = vst [vmem:[%s419] sm:$0xff] %v472
        %474 = vst [vmem:[%s405] sm:$0xff] %v460
        %s475 = sand.u32 %s189, 1
        %s476 = scalar_lea.sflag [#allocation4], %s475
        %s477 = sand.u32 %s189, 1
        %s478 = smul.addr %s477, 8
        %s479 = scalar_lea.vmem [#allocation7], %s478
        %s480 = sand.u32 %s31, 1
        %s481 = scalar_lea.sflag [#allocation9], %s480
        %s482 = sand.u32 %s217, 1
        %s483 = smul.addr %s482, 8
        %s484 = scalar_lea.vmem [#allocation8], %s483
        %s485 = sand.u32 %s31, 1
        %s486 = scalar_lea.sflag [#allocation9], %s485
        %s487 = sand.u32 %s245, 1
        %s488 = smul.addr %s487, 8
        %s489 = scalar_lea.vmem [#allocation10], %s488
        // Predicated region
        $region49: #{tpu_custom_call.1} parent=39 // pred_check
          %p490 = pneg %p199
        $region50: #{tpu_custom_call.1} parent=39 // pred_check_branch
          %492 = sbr.rel (%p490) target = $region52
        $region51: #{tpu_custom_call.1} parent=39 // pred_region
          %s494 = ssub.s32 128, 128
          %495 = vsyncadd %s476, %s494
          %s496 = smul.addr %s35, 2
          %s497 = sadd.s32 %s36, %s496
          %s498 = smul.addr %s497, 128
          %s499 = scalar_lea.hbm %s5, %s498
          %s501 = sshll.u32 %s479, 4
          %s502 = int_to_ptr.vmem [resolvable:$true] %s501
          %504 = dma.vmem_to_hbm [thread:$0]  %s502, 128, %s499, %s476
        $region52: #{tpu_custom_call.1} parent=39 // pred_fallthru
          _
        // Predicated region
        $region53: #{tpu_custom_call.1} parent=39 // pred_check
          %p505 = pneg %p227
        $region54: #{tpu_custom_call.1} parent=39 // pred_check_branch
          %507 = sbr.rel (%p505) target = $region56
        $region55: #{tpu_custom_call.1} parent=39 // pred_region
          %s509 = ssub.s32 128, 128
          %510 = vsyncadd %s481, %s509
          %s511 = smul.addr %s35, 2
          %s512 = sadd.s32 %s36, %s511
          %s513 = smul.addr %s512, 128
          %s514 = scalar_lea.hbm %s6, %s513
          %s516 = sshll.u32 %s484, 4
          %s517 = int_to_ptr.vmem [resolvable:$true] %s516
          %519 = dma.vmem_to_hbm [thread:$0]  %s517, 128, %s514, %s481
        $region56: #{tpu_custom_call.1} parent=39 // pred_fallthru
          _
        // Predicated region
        $region57: #{tpu_custom_call.1} parent=39 // pred_check
          %p520 = pneg %p255
        $region58: #{tpu_custom_call.1} parent=39 // pred_check_branch
          %522 = sbr.rel (%p520) target = $region60
        $region59: #{tpu_custom_call.1} parent=39 // pred_region
          %s524 = ssub.s32 128, 128
          %525 = vsyncadd %s486, %s524
          %s526 = smul.addr %s35, 2
          %s527 = sadd.s32 %s36, %s526
          %s528 = smul.addr %s527, 128
          %s529 = scalar_lea.hbm %s7, %s528
          %s531 = sshll.u32 %s489, 4
          %s532 = int_to_ptr.vmem [resolvable:$true] %s531
          %534 = dma.vmem_to_hbm [thread:$0]  %s532, 128, %s529, %s486
        $region60: #{tpu_custom_call.1} parent=39 // pred_fallthru
          _
      $region40: #{tpu_custom_call.1} parent=5 // pred_fallthru
        _
      %p535 = scmp.le.s32.totalorder 2, %s26
      // Predicated region
      $region61: #{tpu_custom_call.1} parent=5 // pred_check
        %p536 = pneg %p535
      $region62: #{tpu_custom_call.1} parent=5 // pred_check_branch
        %538 = sbr.rel (%p536) target = $region64
      $region63: #{tpu_custom_call.1} parent=5 // pred_region
        %s539 = ssub.s32 %s26, 2
        // Predicated region
        $region65: #{tpu_custom_call.1} parent=63 // pred_check
          %p540 = pneg %p205
        $region66: #{tpu_custom_call.1} parent=63 // pred_check_branch
          %542 = sbr.rel (%p540) target = $region68
        $region67: #{tpu_custom_call.1} parent=63 // pred_region
          %s543 = sand.u32 %s190, 1
          %s544 = scalar_lea.sflag [#allocation4], %s543
          %s545 = sand.u32 %s190, 1
          %s546 = smul.addr %s545, 8
          %s547 = scalar_lea.vmem [#allocation7], %s546
          %548 = dma.done %s544, 128
        $region68: #{tpu_custom_call.1} parent=63 // pred_fallthru
          _
        // Predicated region
        $region69: #{tpu_custom_call.1} parent=63 // pred_check
          %p549 = pneg %p233
        $region70: #{tpu_custom_call.1} parent=63 // pred_check_branch
          %551 = sbr.rel (%p549) target = $region72
        $region71: #{tpu_custom_call.1} parent=63 // pred_region
          %s552 = sand.u32 %s32, 1
          %s553 = scalar_lea.sflag [#allocation9], %s552
          %s554 = sand.u32 %s218, 1
          %s555 = smul.addr %s554, 8
          %s556 = scalar_lea.vmem [#allocation8], %s555
          %557 = dma.done %s553, 128
        $region72: #{tpu_custom_call.1} parent=63 // pred_fallthru
          _
        // Predicated region
        $region73: #{tpu_custom_call.1} parent=63 // pred_check
          %p558 = pneg %p261
        $region74: #{tpu_custom_call.1} parent=63 // pred_check_branch
          %560 = sbr.rel (%p558) target = $region76
        $region75: #{tpu_custom_call.1} parent=63 // pred_region
          %s561 = sand.u32 %s32, 1
          %s562 = scalar_lea.sflag [#allocation9], %s561
          %s563 = sand.u32 %s246, 1
          %s564 = smul.addr %s563, 8
          %s565 = scalar_lea.vmem [#allocation10], %s564
          %566 = dma.done %s562, 128
        $region76: #{tpu_custom_call.1} parent=63 // pred_fallthru
          _
      $region64: #{tpu_custom_call.1} parent=5 // pred_fallthru
        _
    $region6: #{tpu_custom_call.1} parent=1 // loop_footer
      %s30 = sadd.s32 1, %s26
    $region7: #{tpu_custom_call.1} parent=1 // loop_footer_branch
      %25 = sbr.rel target = $region3
    $region8: #{tpu_custom_call.1} parent=1 // loop_exit
      _
    %567 = vsyncpa [#allocation3], 1
    %s568 = scalar_lea.sflag [#allocation3], 1
    %569 = vsyncpa %s568, 1
    %570 = vsyncpa [#allocation6], 1
    %s571 = scalar_lea.sflag [#allocation6], 1
    %572 = vsyncpa %s571, 1
    %573 = vsyncpa [#allocation4], 1
    %s574 = scalar_lea.sflag [#allocation4], 1
    %575 = vsyncpa %s574, 1
    %576 = vsyncpa [#allocation9], 1
    %s577 = scalar_lea.sflag [#allocation9], 1
    %578 = vsyncpa %s577, 1

</llo_original>
